<compile_context>
chip_gen: v7x
topology: tpu7x:2x2x1
jax: 0.10.0
libtpu: 0.0.40
codegen_flags: <defaults>
</compile_context>

<pallas_src>
import functools

import jax
import jax.numpy as jnp
from jax.experimental import pallas as pl
from jax.experimental.pallas import tpu as pltpu


def _round_up(x: int, m: int) -> int:
    return ((x + m - 1) // m) * m


@functools.lru_cache(maxsize=1)
def _vmem_budget_bytes() -> int:
    """Generation-aware VMEM budget: 75% of reported capacity (headroom for
    Mosaic internal scratch).  Falls back to 64 MiB (v7x per-TC size)."""
    cap = 64 * 1024 * 1024
    try:
        cap = int(getattr(pltpu.get_tpu_info(), "vmem_capacity_bytes", cap))
    except Exception:
        pass
    return (cap * 3) // 4


def _int_pow(x, degree: int):
    """x ** degree for a small static integer degree (plain VPU multiplies)."""
    if degree <= 0:
        return jnp.ones_like(x)
    r = x
    for _ in range(degree - 1):
        r = r * x
    return r


# ----------------------------- kernel bodies --------------------------------

def _poly_single_k(degree, a_ref, b_ref, o_ref):
    """o = (a @ b) ** degree with the whole contraction axis in one tile:
    no K grid axis, no accumulator, one uninterrupted MXU chain per tile."""
    acc = jnp.dot(a_ref[...], b_ref[...], preferred_element_type=jnp.float32)
    o_ref[...] = _int_pow(acc, degree).astype(o_ref.dtype)


def _poly_multi_k_inplace(degree, a_ref, b_ref, o_ref):
    """K-tiled path, f32 output: the output block index is constant across k,
    so o_ref stays VMEM-resident and doubles as the accumulator."""
    k = pl.program_id(2)

    @pl.when(k == 0)
    def _():
        o_ref[...] = jnp.zeros_like(o_ref)

    o_ref[...] += jnp.dot(a_ref[...], b_ref[...],
                          preferred_element_type=jnp.float32)

    @pl.when(k == pl.num_programs(2) - 1)
    def _():
        o_ref[...] = _int_pow(o_ref[...], degree)


def _poly_multi_k_scratch(degree, a_ref, b_ref, o_ref, acc_ref):
    """K-tiled path with a narrow output dtype: accumulate in an f32 scratch
    and cast once at the final k step."""
    k = pl.program_id(2)

    @pl.when(k == 0)
    def _():
        acc_ref[...] = jnp.zeros_like(acc_ref)

    acc_ref[...] += jnp.dot(a_ref[...], b_ref[...],
                            preferred_element_type=jnp.float32)

    @pl.when(k == pl.num_programs(2) - 1)
    def _():
        o_ref[...] = _int_pow(acc_ref[...], degree).astype(o_ref.dtype)


# ------------------------------- wrapper -------------------------------------

@functools.partial(
    jax.jit,
    static_argnames=("degree", "tm", "tn", "tk", "compute_dtype", "out_dtype"))
def polynomial_kernel(x1, x2, degree, *, tm=None, tn=None, tk=None,
                      compute_dtype=None, out_dtype=jnp.float32):
    """K = (x1 @ x2.T) ** degree via a tiled Pallas TPU kernel.

    x1: (M, D), x2: (N, D); the properties axis D is contracted.
    compute_dtype: operand streaming/multiply dtype (jnp.bfloat16 gives full
      MXU rate and half the operand HBM traffic); accumulation is float32.
    out_dtype: output dtype (float32 default; bfloat16 halves the writeback).
    """
    M, D = x1.shape
    N, D2 = x2.shape
    if D != D2:
        raise ValueError("properties dimensions must match")

    if compute_dtype is None:
        compute_dtype = x1.dtype
    compute_dtype = jnp.dtype(compute_dtype)
    out_dtype = jnp.dtype(out_dtype)
    itemsize = compute_dtype.itemsize
    sub_align = max(8, 32 // max(itemsize, 1))   # 8 for f32, 16 for bf16
    budget = _vmem_budget_bytes()

    # ---- tile selection ----------------------------------------------------
    # Reuse-aware defaults: A is re-read Np/tn times, B is re-read Mp/tm times,
    # so the larger operand gets the bigger output-tile extent along its reuse
    # axis (fewer HBM re-reads of the dominant matrix).
    bytes_a = M * D
    bytes_b = N * D
    if tm is None:
        tm = min(512 if bytes_b >= bytes_a else 256, _round_up(M, sub_align))
    else:
        tm = _round_up(tm, sub_align)
    if tn is None:
        tn = min(2048 if bytes_a > bytes_b else 1024, _round_up(N, 128))
    else:
        tn = _round_up(tn, 128)

    def fits(tm_, tn_, tk_):
        # double-buffered operand tiles + f32 output block (+ possible f32
        # accumulator scratch), conservatively.
        return (2 * (tm_ * tk_ + tk_ * tn_) * itemsize
                + 3 * tm_ * tn_ * 4) <= budget

    Dp = _round_up(D, 128)
    if tk is None:
        if fits(tm, tn, Dp):
            tk = Dp                      # fuse whole contraction: no K axis
        else:
            n_k = max(2, -(-Dp // 512))
            tk = _round_up(-(-Dp // n_k), 128)
            while not fits(tm, tn, tk) and tn > 256:
                tn = max(256, _round_up(tn // 2, 128))
            while not fits(tm, tn, tk) and tm > sub_align:
                tm = max(sub_align, _round_up(tm // 2, sub_align))
            while not fits(tm, tn, tk) and tk > 128:
                tk = max(128, _round_up(tk // 2, 128))
    else:
        tk = _round_up(tk, 128)

    Dp = _round_up(Dp, tk)
    n_k = Dp // tk
    Mp = _round_up(M, tm)
    Np = _round_up(N, tn)

    # ---- wrapper-side layout (fused under jit) -----------------------------
    # K MUST stay zero-padded so garbage never enters the contraction; padded
    # M/N rows/cols only produce extra output that is sliced off at the end.
    a = x1 if (Mp == M and Dp == D) else jnp.pad(x1, ((0, Mp - M), (0, Dp - D)))
    b = x2 if (Np == N and Dp == D) else jnp.pad(x2, ((0, Np - N), (0, Dp - D)))
    a = a.astype(compute_dtype)                       # (Mp, Dp)
    b = b.astype(compute_dtype).T                     # (Dp, Np) one-time transpose

    cost = pl.CostEstimate(
        flops=2 * Mp * Np * Dp + max(degree - 1, 0) * Mp * Np,
        transcendentals=0,
        bytes_accessed=(Mp * Dp * (Np // tn) + Dp * Np * (Mp // tm)) * itemsize
                       + Mp * Np * out_dtype.itemsize,
    )
    params = pltpu.CompilerParams(
        dimension_semantics=(("parallel", "parallel") if n_k == 1
                             else ("parallel", "parallel", "arbitrary")),
        vmem_limit_bytes=int(budget),
    )

    if n_k == 1:
        out = pl.pallas_call(
            functools.partial(_poly_single_k, degree),
            out_shape=jax.ShapeDtypeStruct((Mp, Np), out_dtype),
            grid_spec=pltpu.PrefetchScalarGridSpec(
                num_scalar_prefetch=0,
                grid=(Mp // tm, Np // tn),
                in_specs=[
                    pl.BlockSpec((tm, Dp), lambda i, j: (i, 0)),
                    pl.BlockSpec((Dp, tn), lambda i, j: (0, j)),
                ],
                out_specs=pl.BlockSpec((tm, tn), lambda i, j: (i, j)),
            ),
            compiler_params=params,
            cost_estimate=cost,
        )(a, b)
    else:
        if out_dtype == jnp.float32:
            kernel = functools.partial(_poly_multi_k_inplace, degree)
            scratch = ()
        else:
            kernel = functools.partial(_poly_multi_k_scratch, degree)
            scratch = (pltpu.VMEM((tm, tn), jnp.float32),)
        out = pl.pallas_call(
            kernel,
            out_shape=jax.ShapeDtypeStruct((Mp, Np), out_dtype),
            grid_spec=pltpu.PrefetchScalarGridSpec(
                num_scalar_prefetch=0,
                grid=(Mp // tm, Np // tn, n_k),
                in_specs=[
                    pl.BlockSpec((tm, tk), lambda i, j, k: (i, k)),
                    pl.BlockSpec((tk, tn), lambda i, j, k: (k, j)),
                ],
                out_specs=pl.BlockSpec((tm, tn), lambda i, j, k: (i, j)),
                scratch_shapes=scratch,
            ),
            compiler_params=params,
            cost_estimate=cost,
        )(a, b)

    return out[:M, :N]


if __name__ == "__main__":
    key = jax.random.PRNGKey(0)
    k1, k2, k3, k4 = jax.random.split(key, 4)

    # --- main case: 128 x 128 samples, 256 properties, degree 3 (f32) ------
    degree = 3
    M, N, D = 128, 128, 256
    x1 = jax.random.normal(k1, (M, D), dtype=jnp.float32) * 0.05
    x2 = jax.random.normal(k2, (N, D), dtype=jnp.float32) * 0.05
    ref = jnp.power(x1 @ x2.T, degree)

    out_f32 = jax.block_until_ready(polynomial_kernel(x1, x2, degree=degree))
    assert out_f32.shape == (M, N)
    assert jnp.allclose(out_f32, ref, rtol=1e-4, atol=1e-6), "f32 mismatch"

    # bf16 operands / f32 accumulation (full MXU rate, half operand traffic) --
    out_bf16 = jax.block_until_ready(
        polynomial_kernel(x1, x2, degree=degree, compute_dtype=jnp.bfloat16))
    assert jnp.allclose(out_bf16, ref, rtol=5e-2, atol=1e-5), "bf16 mismatch"

    # Force a small tk to exercise the K-tiled accumulate-in-output path -----
    out_kt = jax.block_until_ready(
        polynomial_kernel(x1, x2, degree=degree, tk=128))
    assert jnp.allclose(out_kt, ref, rtol=1e-4, atol=1e-6), "k-tiled mismatch"

    # bf16 output (K-tiled path with f32 scratch accumulator) ----------------
    out_bo = jax.block_until_ready(
        polynomial_kernel(x1, x2, degree=degree, tk=128,
                          out_dtype=jnp.bfloat16))
    assert out_bo.dtype == jnp.bfloat16
    assert jnp.allclose(out_bo.astype(jnp.float32), ref,
                        rtol=5e-2, atol=1e-4), "bf16-out mismatch"

    # Ragged (non-tile-divisible) shapes exercise the pad/slice path ---------
    M2, N2, D2 = 200, 136, 300
    y1 = jax.random.normal(k3, (M2, D2), dtype=jnp.float32) * 0.05
    y2 = jax.random.normal(k4, (N2, D2), dtype=jnp.float32) * 0.05
    out_r = jax.block_until_ready(polynomial_kernel(y1, y2, degree=2))
    ref_r = jnp.power(y1 @ y2.T, 2)
    assert out_r.shape == (M2, N2)
    assert jnp.allclose(out_r, ref_r, rtol=1e-4, atol=1e-6), "ragged mismatch"

    print("KERNEL_OK")
</pallas_src>

<mosaic_0001>
module attributes {stable_mosaic.version = 11 : i64} {
  func.func @_poly_single_k(%arg0: i32, %arg1: i32, %arg2: memref<128x256xf32, #tpu.memory_space<vmem>>, %arg3: memref<256x128xf32, #tpu.memory_space<vmem>>, %arg4: memref<128x128xf32, #tpu.memory_space<vmem>>) attributes {dimension_semantics = [#tpu.dimension_semantics<parallel>, #tpu.dimension_semantics<parallel>], iteration_bounds = array<i64: 1, 1>, scalar_prefetch = 0 : i64, scratch_operands = 0 : i64, tpu.core_type = #tpu.core_type<tc>, window_params = [{transform_indices = @transform_0, window_bounds = array<i64: 128, 256>}, {transform_indices = @transform_1, window_bounds = array<i64: 256, 128>}, {transform_indices = @transform_2, window_bounds = array<i64: 128, 128>}]} {
    %c0 = arith.constant 0 : index
    %c0_0 = arith.constant 0 : index
    %0 = vector.load %arg2[%c0, %c0_0] : memref<128x256xf32, #tpu.memory_space<vmem>>, vector<128x256xf32>
    %c0_1 = arith.constant 0 : index
    %c0_2 = arith.constant 0 : index
    %1 = vector.load %arg3[%c0_1, %c0_2] : memref<256x128xf32, #tpu.memory_space<vmem>>, vector<256x128xf32>
    %cst = arith.constant dense<0.000000e+00> : vector<128x128xf32>
    %2 = tpu.matmul %0, %1, %cst {dimension_numbers = #tpu.dot_dimension_numbers<[1], [0], [0], [1], [0, 0, 1, 1], [], []>} : vector<128x256xf32>, vector<256x128xf32>, vector<128x128xf32> -> vector<128x128xf32>
    %3 = arith.mulf %2, %2 : vector<128x128xf32>
    %4 = arith.mulf %3, %2 : vector<128x128xf32>
    %c0_3 = arith.constant 0 : index
    %c0_4 = arith.constant 0 : index
    %5 = vector.load %arg4[%c0_3, %c0_4] : memref<128x128xf32, #tpu.memory_space<vmem>>, vector<128x128xf32>
    tpu.vector_store %arg4[%c0_3, %c0_4], %4 {strides = array<i32>} : memref<128x128xf32, #tpu.memory_space<vmem>>, vector<128x128xf32>,
    return
  }
  func.func @transform_0(%arg0: i32, %arg1: i32) -> (i32, i32) {
    %c0_i32 = arith.constant 0 : i32
    %c0_i32_0 = arith.constant 0 : i32
    return %arg0, %c0_i32 : i32, i32
  }
  func.func @transform_1(%arg0: i32, %arg1: i32) -> (i32, i32) {
    %c0_i32 = arith.constant 0 : i32
    %c0_i32_0 = arith.constant 0 : i32
    return %c0_i32, %arg1 : i32, i32
  }
  func.func @transform_2(%arg0: i32, %arg1: i32) -> (i32, i32) {
    %c0_i32 = arith.constant 0 : i32
    return %arg0, %arg1 : i32, i32
  }
}

</mosaic_0001>

<llo_original>
// kernel: polynomial_kernel.1
$region0: #{polynomial_kernel.1}
  #allocation0 [shape = 'u32[]', space=smem, size = 0x4, offset = 0x4, fixed_abs, tag = 'smem constant byte address 0x4 - core index']
  #allocation1 [shape = 'u32[144,128]{1,0:T(1,128)}', space=vmem, size = 0x12000, scoped, tag = 'internal scratch']
  %s0 = inlined_call_operand.vmem [shape: f32[128,256], index: 0, kind: input, shape index: {}]
  %s1 = inlined_call_operand.vmem [shape: f32[256,128], index: 1, kind: input, shape index: {}]
  %s2 = inlined_call_operand.hbm [shape: f32[128,128], index: 2, kind: output, shape index: {}]
  %s3 = sld [smem:[#allocation0]]
  $region18: #{polynomial_kernel.1} parent=0
    _
  %s5 = ssub.s32 1, %s3
  %s6 = scalar_select 0, %s5, %s3
  $region1: #{polynomial_kernel.1} parent=0
    #allocation2 [shape = 'u8[65536]{0}', space=vmem, size = 0x10000, scoped, tag = 'output window, operand 0, single buffered']
    #allocation3 [shape = 's32[1]{0}', space=sflag, size = 0x4, scoped, tag = 'scoped memory for polynomial_kernel.1']
    %7 = vsyncpa [#allocation3], 0
    // Predicated region
    $region2: #{polynomial_kernel.1} parent=1 // pred_check
      _
    $region3: #{polynomial_kernel.1} parent=1 // pred_check_branch
      %9 = sbr.rel (0) target = $region5
    $region4: #{polynomial_kernel.1} parent=1 // pred_region
      _
    $region5: #{polynomial_kernel.1} parent=1 // pred_fallthru
      _
    // Predicated region
    $region6: #{polynomial_kernel.1} parent=1 // pred_check
      _
    $region7: #{polynomial_kernel.1} parent=1 // pred_check_branch
      %11 = sbr.rel (0) target = $region9
    $region8: #{polynomial_kernel.1} parent=1 // pred_region
      _
    $region9: #{polynomial_kernel.1} parent=1 // pred_fallthru
      _
    %v12 = vld [vmem:[%s0] sm:$0xff]
    %v13 = vld [vmem:[%s0 + $0x8] sm:$0xff]
    %v14 = vld [vmem:[%s0 + $0x10] sm:$0xff]
    %v15 = vld [vmem:[%s0 + $0x18] sm:$0xff]
    %v16 = vld [vmem:[%s0 + $0x20] sm:$0xff]
    %v17 = vld [vmem:[%s0 + $0x28] sm:$0xff]
    %v18 = vld [vmem:[%s0 + $0x30] sm:$0xff]
    %v19 = vld [vmem:[%s0 + $0x38] sm:$0xff]
    %v20 = vld [vmem:[%s0 + $0x40] sm:$0xff]
    %v21 = vld [vmem:[%s0 + $0x48] sm:$0xff]
    %v22 = vld [vmem:[%s0 + $0x50] sm:$0xff]
    %v23 = vld [vmem:[%s0 + $0x58] sm:$0xff]
    %v24 = vld [vmem:[%s0 + $0x60] sm:$0xff]
    %v25 = vld [vmem:[%s0 + $0x68] sm:$0xff]
    %v26 = vld [vmem:[%s0 + $0x70] sm:$0xff]
    %v27 = vld [vmem:[%s0 + $0x78] sm:$0xff]
    %v28 = vld [vmem:[%s0 + $0x80] sm:$0xff]
    %v29 = vld [vmem:[%s0 + $0x88] sm:$0xff]
    %v30 = vld [vmem:[%s0 + $0x90] sm:$0xff]
    %v31 = vld [vmem:[%s0 + $0x98] sm:$0xff]
    %v32 = vld [vmem:[%s0 + $0xa0] sm:$0xff]
    %v33 = vld [vmem:[%s0 + $0xa8] sm:$0xff]
    %v34 = vld [vmem:[%s0 + $0xb0] sm:$0xff]
    %v35 = vld [vmem:[%s0 + $0xb8] sm:$0xff]
    %v36 = vld [vmem:[%s0 + $0xc0] sm:$0xff]
    %v37 = vld [vmem:[%s0 + $0xc8] sm:$0xff]
    %v38 = vld [vmem:[%s0 + $0xd0] sm:$0xff]
    %v39 = vld [vmem:[%s0 + $0xd8] sm:$0xff]
    %v40 = vld [vmem:[%s0 + $0xe0] sm:$0xff]
    %v41 = vld [vmem:[%s0 + $0xe8] sm:$0xff]
    %v42 = vld [vmem:[%s0 + $0xf0] sm:$0xff]
    %v43 = vld [vmem:[%s0 + $0xf8] sm:$0xff]
    %v44 = vld [vmem:[%s1] sm:$0xff]
    %v45 = vld [vmem:[%s1 + $0x8] sm:$0xff]
    %v46 = vld [vmem:[%s1 + $0x10] sm:$0xff]
    %v47 = vld [vmem:[%s1 + $0x18] sm:$0xff]
    %v48 = vld [vmem:[%s1 + $0x20] sm:$0xff]
    %v49 = vld [vmem:[%s1 + $0x28] sm:$0xff]
    %v50 = vld [vmem:[%s1 + $0x30] sm:$0xff]
    %v51 = vld [vmem:[%s1 + $0x38] sm:$0xff]
    %v52 = vld [vmem:[%s1 + $0x40] sm:$0xff]
    %v53 = vld [vmem:[%s1 + $0x48] sm:$0xff]
    %v54 = vld [vmem:[%s1 + $0x50] sm:$0xff]
    %v55 = vld [vmem:[%s1 + $0x58] sm:$0xff]
    %v56 = vld [vmem:[%s1 + $0x60] sm:$0xff]
    %v57 = vld [vmem:[%s1 + $0x68] sm:$0xff]
    %v58 = vld [vmem:[%s1 + $0x70] sm:$0xff]
    %v59 = vld [vmem:[%s1 + $0x78] sm:$0xff]
    %v60 = vld [vmem:[%s1 + $0x80] sm:$0xff]
    %v61 = vld [vmem:[%s1 + $0x88] sm:$0xff]
    %v62 = vld [vmem:[%s1 + $0x90] sm:$0xff]
    %v63 = vld [vmem:[%s1 + $0x98] sm:$0xff]
    %v64 = vld [vmem:[%s1 + $0xa0] sm:$0xff]
    %v65 = vld [vmem:[%s1 + $0xa8] sm:$0xff]
    %v66 = vld [vmem:[%s1 + $0xb0] sm:$0xff]
    %v67 = vld [vmem:[%s1 + $0xb8] sm:$0xff]
    %v68 = vld [vmem:[%s1 + $0xc0] sm:$0xff]
    %v69 = vld [vmem:[%s1 + $0xc8] sm:$0xff]
    %v70 = vld [vmem:[%s1 + $0xd0] sm:$0xff]
    %v71 = vld [vmem:[%s1 + $0xd8] sm:$0xff]
    %v72 = vld [vmem:[%s1 + $0xe0] sm:$0xff]
    %v73 = vld [vmem:[%s1 + $0xe8] sm:$0xff]
    %v74 = vld [vmem:[%s1 + $0xf0] sm:$0xff]
    %v75 = vld [vmem:[%s1 + $0xf8] sm:$0xff]
    %76 = vmatprep.subr.mxu0 0.0
    %77 = vmatpush1.msra.mxu0 %v44
    %78 = vmatprep.subr.mxu0 0.0
    %79 = vmatpush1.msra.mxu0 %v45
    %80 = vmatprep.subr.mxu0 0.0
    %81 = vmatpush1.msra.mxu0 %v46
    %82 = vmatprep.subr.mxu0 0.0
    %83 = vmatpush1.msra.mxu0 %v47
    %84 = vmatprep.subr.mxu0 0.0
    %85 = vmatpush1.msra.mxu0 %v48
    %86 = vmatprep.subr.mxu0 0.0
    %87 = vmatpush1.msra.mxu0 %v49
    %88 = vmatprep.subr.mxu0 0.0
    %89 = vmatpush1.msra.mxu0 %v50
    %90 = vmatprep.subr.mxu0 0.0
    %91 = vmatpush1.msra.mxu0 %v51
    %92 = vmatprep.subr.mxu0 0.0
    %93 = vmatpush1.msra.mxu0 %v52
    %94 = vmatprep.subr.mxu0 0.0
    %95 = vmatpush1.msra.mxu0 %v53
    %96 = vmatprep.subr.mxu0 0.0
    %97 = vmatpush1.msra.mxu0 %v54
    %98 = vmatprep.subr.mxu0 0.0
    %99 = vmatpush1.msra.mxu0 %v55
    %100 = vmatprep.subr.mxu0 0.0
    %101 = vmatpush1.msra.mxu0 %v56
    %102 = vmatprep.subr.mxu0 0.0
    %103 = vmatpush1.msra.mxu0 %v57
    %104 = vmatprep.subr.mxu0 0.0
    %105 = vmatpush1.msra.mxu0 %v58
    %106 = vmatprep.subr.mxu0 0.0
    %107 = vmatpush1.msra.mxu0 %v59
    %108 = vmatprep.subr.mxu0 0.0
    %109 = vmatpush1.msra.mxu0 %v60
    %110 = vmatprep.subr.mxu0 0.0
    %111 = vmatpush1.msra.mxu0 %v61
    %112 = vmatprep.subr.mxu0 0.0
    %113 = vmatpush1.msra.mxu0 %v62
    %114 = vmatprep.subr.mxu0 0.0
    %115 = vmatpush1.msra.mxu0 %v63
    %116 = vmatprep.subr.mxu0 0.0
    %117 = vmatpush1.msra.mxu0 %v64
    %118 = vmatprep.subr.mxu0 0.0
    %119 = vmatpush1.msra.mxu0 %v65
    %120 = vmatprep.subr.mxu0 0.0
    %121 = vmatpush1.msra.mxu0 %v66
    %122 = vmatprep.subr.mxu0 0.0
    %123 = vmatpush1.msra.mxu0 %v67
    %124 = vmatprep.subr.mxu0 0.0
    %125 = vmatpush1.msra.mxu0 %v68
    %126 = vmatprep.subr.mxu0 0.0
    %127 = vmatpush1.msra.mxu0 %v69
    %128 = vmatprep.subr.mxu0 0.0
    %129 = vmatpush1.msra.mxu0 %v70
    %130 = vmatprep.subr.mxu0 0.0
    %131 = vmatpush1.msra.mxu0 %v71
    %132 = vmatprep.subr.mxu0 0.0
    %133 = vmatpush1.msra.mxu0 %v72
    %134 = vmatprep.subr.mxu0 0.0
    %135 = vmatpush1.msra.mxu0 %v73
    %136 = vmatprep.subr.mxu0 0.0
    %137 = vmatpush1.msra.mxu0 %v74
    %138 = vmatprep.subr.mxu0 0.0
    %139 = vmatpush1.msra.mxu0 %v75
    %140 = vmatprep.mubr.f32.mxu0 %v13
    %141 = vmatmul.mubr.f32.gmra.mrb[0].mxu0 %v12
    %v142 = vpop.f32.mrb[0].mxu0
    %v143 = vadd.f32 0.0, %v142
    %v144 = vpop.f32.mrb[0].mxu0
    %145 = vmatprep.mubr.f32.mxu0 %v15
    %146 = vmatmul.mubr.f32.gmra.mrb[0].mxu0 %v14
    %v147 = vpop.f32.mrb[0].mxu0
    %v148 = vadd.f32 0.0, %v147
    %v149 = vpop.f32.mrb[0].mxu0
    %150 = vmatprep.mubr.f32.mxu0 %v17
    %151 = vmatmul.mubr.f32.gmra.mrb[0].mxu0 %v16
    %v152 = vpop.f32.mrb[0].mxu0
    %v153 = vadd.f32 0.0, %v152
    %v154 = vpop.f32.mrb[0].mxu0
    %155 = vmatprep.mubr.f32.mxu0 %v19
    %156 = vmatmul.mubr.f32.gmra.mrb[0].mxu0 %v18
    %v157 = vpop.f32.mrb[0].mxu0
    %v158 = vadd.f32 0.0, %v157
    %v159 = vpop.f32.mrb[0].mxu0
    %160 = vmatprep.mubr.f32.mxu0 %v21
    %161 = vmatmul.mubr.f32.gmra.mrb[0].mxu0 %v20
    %v162 = vpop.f32.mrb[0].mxu0
    %v163 = vadd.f32 0.0, %v162
    %v164 = vpop.f32.mrb[0].mxu0
    %165 = vmatprep.mubr.f32.mxu0 %v23
    %166 = vmatmul.mubr.f32.gmra.mrb[0].mxu0 %v22
    %v167 = vpop.f32.mrb[0].mxu0
    %v168 = vadd.f32 0.0, %v167
    %v169 = vpop.f32.mrb[0].mxu0
    %170 = vmatprep.mubr.f32.mxu0 %v25
    %171 = vmatmul.mubr.f32.gmra.mrb[0].mxu0 %v24
    %v172 = vpop.f32.mrb[0].mxu0
    %v173 = vadd.f32 0.0, %v172
    %v174 = vpop.f32.mrb[0].mxu0
    %175 = vmatprep.mubr.f32.mxu0 %v27
    %176 = vmatmul.mubr.f32.gmra.mrb[0].mxu0 %v26
    %v177 = vpop.f32.mrb[0].mxu0
    %v178 = vadd.f32 0.0, %v177
    %v179 = vpop.f32.mrb[0].mxu0
    %180 = vmatprep.mubr.f32.mxu0 %v29
    %181 = vmatmul.mubr.f32.gmra.mrb[0].mxu0 %v28
    %v182 = vpop.f32.mrb[0].mxu0
    %v183 = vadd.f32 0.0, %v182
    %v184 = vpop.f32.mrb[0].mxu0
    %185 = vmatprep.mubr.f32.mxu0 %v31
    %186 = vmatmul.mubr.f32.gmra.mrb[0].mxu0 %v30
    %v187 = vpop.f32.mrb[0].mxu0
    %v188 = vadd.f32 0.0, %v187
    %v189 = vpop.f32.mrb[0].mxu0
    %190 = vmatprep.mubr.f32.mxu0 %v33
    %191 = vmatmul.mubr.f32.gmra.mrb[0].mxu0 %v32
    %v192 = vpop.f32.mrb[0].mxu0
    %v193 = vadd.f32 0.0, %v192
    %v194 = vpop.f32.mrb[0].mxu0
    %195 = vmatprep.mubr.f32.mxu0 %v35
    %196 = vmatmul.mubr.f32.gmra.mrb[0].mxu0 %v34
    %v197 = vpop.f32.mrb[0].mxu0
    %v198 = vadd.f32 0.0, %v197
    %v199 = vpop.f32.mrb[0].mxu0
    %200 = vmatprep.mubr.f32.mxu0 %v37
    %201 = vmatmul.mubr.f32.gmra.mrb[0].mxu0 %v36
    %v202 = vpop.f32.mrb[0].mxu0
    %v203 = vadd.f32 0.0, %v202
    %v204 = vpop.f32.mrb[0].mxu0
    %205 = vmatprep.mubr.f32.mxu0 %v39
    %206 = vmatmul.mubr.f32.gmra.mrb[0].mxu0 %v38
    %v207 = vpop.f32.mrb[0].mxu0
    %v208 = vadd.f32 0.0, %v207
    %v209 = vpop.f32.mrb[0].mxu0
    %210 = vmatprep.mubr.f32.mxu0 %v41
    %211 = vmatmul.mubr.f32.gmra.mrb[0].mxu0 %v40
    %v212 = vpop.f32.mrb[0].mxu0
    %v213 = vadd.f32 0.0, %v212
    %v214 = vpop.f32.mrb[0].mxu0
    %215 = vmatprep.mubr.f32.mxu0 %v43
    %216 = vmatmul.mubr.f32.gmra.mrb[0].mxu0 %v42
    %v217 = vpop.f32.mrb[0].mxu0
    %v218 = vadd.f32 0.0, %v217
    %v219 = vpop.f32.mrb[0].mxu0
    %220 = vdwg.mxu0
    %v221 = vmul.f32 %v143, %v143
    %v222 = vmul.f32 %v148, %v148
    %v223 = vmul.f32 %v153, %v153
    %v224 = vmul.f32 %v158, %v158
    %v225 = vmul.f32 %v163, %v163
    %v226 = vmul.f32 %v168, %v168
    %v227 = vmul.f32 %v173, %v173
    %v228 = vmul.f32 %v178, %v178
    %v229 = vmul.f32 %v183, %v183
    %v230 = vmul.f32 %v188, %v188
    %v231 = vmul.f32 %v193, %v193
    %v232 = vmul.f32 %v198, %v198
    %v233 = vmul.f32 %v203, %v203
    %v234 = vmul.f32 %v208, %v208
    %v235 = vmul.f32 %v213, %v213
    %v236 = vmul.f32 %v218, %v218
    %v237 = vmul.f32 %v221, %v143
    %v238 = vmul.f32 %v222, %v148
    %v239 = vmul.f32 %v223, %v153
    %v240 = vmul.f32 %v224, %v158
    %v241 = vmul.f32 %v225, %v163
    %v242 = vmul.f32 %v226, %v168
    %v243 = vmul.f32 %v227, %v173
    %v244 = vmul.f32 %v228, %v178
    %v245 = vmul.f32 %v229, %v183
    %v246 = vmul.f32 %v230, %v188
    %v247 = vmul.f32 %v231, %v193
    %v248 = vmul.f32 %v232, %v198
    %v249 = vmul.f32 %v233, %v203
    %v250 = vmul.f32 %v234, %v208
    %v251 = vmul.f32 %v235, %v213
    %v252 = vmul.f32 %v236, %v218
    %253 = vst [vmem:[#allocation2] sm:$0xff] %v237
    %254 = vst [vmem:[#allocation2 + $0x8] sm:$0xff] %v238
    %255 = vst [vmem:[#allocation2 + $0x10] sm:$0xff] %v239
    %256 = vst [vmem:[#allocation2 + $0x18] sm:$0xff] %v240
    %257 = vst [vmem:[#allocation2 + $0x20] sm:$0xff] %v241
    %258 = vst [vmem:[#allocation2 + $0x28] sm:$0xff] %v242
    %259 = vst [vmem:[#allocation2 + $0x30] sm:$0xff] %v243
    %260 = vst [vmem:[#allocation2 + $0x38] sm:$0xff] %v244
    %261 = vst [vmem:[#allocation2 + $0x40] sm:$0xff] %v245
    %262 = vst [vmem:[#allocation2 + $0x48] sm:$0xff] %v246
    %263 = vst [vmem:[#allocation2 + $0x50] sm:$0xff] %v247
    %264 = vst [vmem:[#allocation2 + $0x58] sm:$0xff] %v248
    %265 = vst [vmem:[#allocation2 + $0x60] sm:$0xff] %v249
    %266 = vst [vmem:[#allocation2 + $0x68] sm:$0xff] %v250
    %267 = vst [vmem:[#allocation2 + $0x70] sm:$0xff] %v251
    %268 = vst [vmem:[#allocation2 + $0x78] sm:$0xff] %v252
    // Predicated region
    $region10: #{polynomial_kernel.1} parent=1 // pred_check
      _
    $region11: #{polynomial_kernel.1} parent=1 // pred_check_branch
      %270 = sbr.rel (0) target = $region13
    $region12: #{polynomial_kernel.1} parent=1 // pred_region
      %s272 = ssub.s32 2048, 2048
      %273 = vsyncadd [#allocation3], %s272
      %s274 = sshll.u32 [#allocation2], 4
      %s275 = int_to_ptr.vmem [resolvable:$true] %s274
      %280 = dma.vmem_to_hbm [thread:$0]  %s275, 2048, %s2, [#allocation3], 128, 128, 8
    $region13: #{polynomial_kernel.1} parent=1 // pred_fallthru
      _
    // Predicated region
    $region14: #{polynomial_kernel.1} parent=1 // pred_check
      _
    $region15: #{polynomial_kernel.1} parent=1 // pred_check_branch
      %282 = sbr.rel (0) target = $region17
    $region16: #{polynomial_kernel.1} parent=1 // pred_region
      %283 = dma.done [#allocation3], 2048
    $region17: #{polynomial_kernel.1} parent=1 // pred_fallthru
      _
    %284 = vsyncpa [#allocation3], 1

</llo_original>
